<compile_context>
chip_gen: v5e
topology: v5e:2x2
jax: 0.10.0
libtpu: 0.0.40
codegen_flags: <defaults>
</compile_context>

<pallas_src>
import functools
import math

import jax
import jax.numpy as jnp
from jax import lax
from jax.experimental import pallas as pl
from jax.experimental.pallas import tpu as pltpu


def _round_up(x, m):
    return (x + m - 1) // m * m


# ------------------------------------------------------------------ Pallas kernel

def _conv_silu_kernel(x_ref, w_ref, b_ref, o_ref, patch_ref, *,
                      N, K, d, Wp, HWp_pad, Cin_pad, silu):
    """Whole batch in one invocation.

    x_ref     : (N, Cin_pad, Lin)        padded input, spatial flattened over (Hp_ext, Wp)
    w_ref     : (Cout_pad, K*K*Cin_pad)  weights, row index = (ky*K + kx)*Cin_pad + ci
    b_ref     : (Cout_pad, 1)            bias column (f32)
    o_ref     : (N, Cout_pad, HWp_pad)   output, spatial flattened over (H, Wp) + lane pad
    patch_ref : (K*K*Cin_pad, N*HWp_pad) im2col scratch (VMEM, compute dtype)
    """
    # Build im2col: tap (ky, kx) is the flattened padded input shifted by ky*d*Wp + kx*d
    # lanes.  Destination row starts (t*Cin_pad) and column starts (n*HWp_pad) are
    # sublane/lane tile aligned, so all stores are unmasked full-tile vst.
    # TODO(synk): at real U2NET sizes build the patch with async DMA copies so the DMA
    # engine absorbs the unaligned lane offsets and overlaps the previous tile's matmul.
    for n in range(N):
        col = n * HWp_pad
        for ky in range(K):
            for kx in range(K):
                t = ky * K + kx
                start = ky * d * Wp + kx * d
                patch_ref[t * Cin_pad:(t + 1) * Cin_pad, col:col + HWp_pad] = \
                    x_ref[n, :, start:start + HWp_pad]

    # One lane-dense MXU contraction over all taps, channels and batch elements.
    acc = jnp.dot(w_ref[...], patch_ref[...], preferred_element_type=jnp.float32)
    acc = acc + b_ref[...]                       # (Cout_pad, 1) broadcasts along the lanes
    if silu:
        # SiLU = x * sigmoid(x).  exp + approx reciprocal run on the EUP slot; one Newton
        # refinement step makes the reciprocal ~exact for two cheap VPU ops.
        denom = 1.0 + jnp.exp(-acc)
        r = pl.reciprocal(denom, approx=True)
        r = r * (2.0 - denom * r)
        acc = acc * r
    for n in range(N):
        o_ref[n, :, :] = acc[:, n * HWp_pad:(n + 1) * HWp_pad].astype(o_ref.dtype)


def conv_silu(x, w, b, *, dilate=1, silu=True, compute_dtype=jnp.bfloat16):
    """SiLU(Conv2d(Cin, Cout, 3, padding=dilate, dilation=dilate, bias=True)(x)).

    x : (N, Cin, H, W)    NCHW, same as the PyTorch module
    w : (Cout, Cin, K, K) OIHW
    b : (Cout,)
    """
    N, Cin, H, W = x.shape
    Cout, _, K, _ = w.shape
    d = int(dilate)
    pad = d * (K // 2)
    Wp = W + 2 * pad

    # Alignment: channels to the sublane packing of the compute dtype, per-image lane
    # extent to a multiple of 128, output channels to a multiple of 8.
    sub = 8 * (4 // jnp.dtype(compute_dtype).itemsize)      # 8 for f32, 16 for bf16
    Cin_pad = _round_up(Cin, sub)
    Cout_pad = _round_up(Cout, 8)
    HWp = H * Wp
    HWp_pad = _round_up(HWp, 128)
    KKC = K * K * Cin_pad

    # Largest lane offset any tap slice reads; pad extra zero rows at the bottom so ONE
    # jnp.pad provides the halo, the zero channels, and the flattened tail in one XLA op.
    max_start = (K - 1) * d * Wp + (K - 1) * d
    Hp_ext = -(-(max_start + HWp_pad) // Wp)                # ceil division
    Lin = Hp_ext * Wp
    # TODO(synk): at real resolutions fold this pad into the kernel (masked edge taps) and
    # write only the W valid columns per row instead of slicing junk columns in the wrapper.
    xp = jnp.pad(x.astype(compute_dtype),
                 ((0, 0), (0, Cin_pad - Cin), (pad, Hp_ext - H - pad), (pad, pad)))
    xp = xp.reshape(N, Cin_pad, Lin)

    # OIHW -> (Cout_pad, K*K*Cin_pad), row order matching the im2col scratch.
    w2 = jnp.transpose(w, (0, 2, 3, 1))                     # (Cout, K, K, Cin)
    w2 = jnp.pad(w2, ((0, Cout_pad - Cout), (0, 0), (0, 0), (0, Cin_pad - Cin)))
    w2 = w2.reshape(Cout_pad, KKC).astype(compute_dtype)
    b2 = jnp.pad(b, (0, Cout_pad - Cout)).reshape(Cout_pad, 1).astype(jnp.float32)

    kernel = functools.partial(_conv_silu_kernel, N=N, K=K, d=d, Wp=Wp,
                               HWp_pad=HWp_pad, Cin_pad=Cin_pad, silu=silu)
    itemsize = jnp.dtype(compute_dtype).itemsize
    cost = pl.CostEstimate(
        flops=2 * Cout_pad * KKC * N * HWp_pad,
        transcendentals=(Cout_pad * N * HWp_pad) if silu else 0,
        bytes_accessed=(N * Cin_pad * Lin + Cout_pad * KKC) * itemsize
                       + Cout_pad * 4 + N * Cout_pad * HWp_pad * x.dtype.itemsize,
    )
    # TODO(synk): at real U2NET sizes tile H into row blocks (grid=(N, H//th), both axes
    # "parallel") so v7x's two TensorCores stay busy for any batch size, and size the blocks
    # so the 9x im2col amplification fits v7x's 64 MiB VMEM (set vmem_limit_bytes w/ headroom).
    out_flat = pl.pallas_call(
        kernel,
        out_shape=jax.ShapeDtypeStruct((N, Cout_pad, HWp_pad), x.dtype),
        grid=(1,),
        in_specs=[
            pl.BlockSpec((N, Cin_pad, Lin), lambda i: (0, 0, 0)),
            pl.BlockSpec((Cout_pad, KKC), lambda i: (0, 0)),
            pl.BlockSpec((Cout_pad, 1), lambda i: (0, 0)),
        ],
        out_specs=pl.BlockSpec((N, Cout_pad, HWp_pad), lambda i: (0, 0, 0)),
        scratch_shapes=[pltpu.VMEM((KKC, N * HWp_pad), compute_dtype)],
        cost_estimate=cost,
        compiler_params=pltpu.CompilerParams(dimension_semantics=("arbitrary",)),
    )(xp, w2, b2)

    # Drop channel / lane padding and the padded-width columns; return NCHW.
    return out_flat[:, :Cout, :HWp].reshape(N, Cout, H, Wp)[:, :, :, :W]


# ------------------------------------------------------------------ reference & init

def conv_silu_reference(x, w, b, *, dilate=1, silu=True):
    d = int(dilate)
    pad = d * (w.shape[-1] // 2)
    y = lax.conv_general_dilated(
        x, w, window_strides=(1, 1), padding=[(pad, pad), (pad, pad)],
        rhs_dilation=(d, d), dimension_numbers=('NCHW', 'OIHW', 'NCHW'))
    y = y + b[None, :, None, None]
    if silu:
        y = y * jax.nn.sigmoid(y)
    return y


def init_conv(key, K, cin, cout):
    kw, kb = jax.random.split(key)
    bound = 1.0 / math.sqrt(cin * K * K)
    w = jax.random.uniform(kw, (cout, cin, K, K), jnp.float32, -bound, bound)
    b = jax.random.uniform(kb, (cout,), jnp.float32, -bound, bound)
    return w, b


# ------------------------------------------------------------------ main

if __name__ == "__main__":
    key = jax.random.PRNGKey(0)
    N, Cin, H, W, Cout = 2, 4, 16, 16, 8
    x = jax.random.normal(jax.random.fold_in(key, 0), (N, Cin, H, W), jnp.float32)
    w, b = init_conv(jax.random.fold_in(key, 1), 3, Cin, Cout)

    ok = True
    for dilate in (1, 2):   # the module's `dilate` parameter changes padding & dilation
        fwd = jax.jit(functools.partial(conv_silu, dilate=dilate, silu=True))
        out = fwd(x, w, b)
        jax.block_until_ready(out)
        assert out.shape == (N, Cout, H, W), out.shape
        ref = conv_silu_reference(x, w, b, dilate=dilate, silu=True)
        err = float(jnp.max(jnp.abs(out - ref)))
        # loose absolute tolerance: MXU operands are bf16 (accumulation in f32)
        ok = ok and bool(jnp.all(jnp.isfinite(out))) and (err < 5e-2)

    if ok:
        print("KERNEL_OK")
    else:
        raise SystemExit("numerical check failed")
</pallas_src>

<mosaic_0001>
module attributes {stable_mosaic.version = 11 : i64} {
  func.func @_conv_silu_kernel(%arg0: i32, %arg1: memref<2x16x432xbf16, #tpu.memory_space<vmem>>, %arg2: memref<8x144xbf16, #tpu.memory_space<vmem>>, %arg3: memref<8x1xf32, #tpu.memory_space<vmem>>, %arg4: memref<2x8x384xf32, #tpu.memory_space<vmem>>, %arg5: memref<144x768xbf16, #tpu.memory_space<vmem>>) attributes {dimension_semantics = [#tpu.dimension_semantics<arbitrary>], iteration_bounds = array<i64: 1>, scalar_prefetch = 0 : i64, scratch_operands = 1 : i64, tpu.core_type = #tpu.core_type<tc>, window_params = [{pipeline_mode = #tpu.pipeline_mode<synchronous>, transform_indices = @transform_0, window_bounds = array<i64: 2, 16, 432>}, {pipeline_mode = #tpu.pipeline_mode<synchronous>, transform_indices = @transform_1, window_bounds = array<i64: 8, 144>}, {pipeline_mode = #tpu.pipeline_mode<synchronous>, transform_indices = @transform_2, window_bounds = array<i64: 8, 1>}, {pipeline_mode = #tpu.pipeline_mode<synchronous>, transform_indices = @transform_3, window_bounds = array<i64: 2, 8, 384>}]} {
    %c0 = arith.constant 0 : index
    %c0_0 = arith.constant 0 : index
    %c0_1 = arith.constant 0 : index
    %0 = vector.load %arg1[%c0, %c0_0, %c0_1] : memref<2x16x432xbf16, #tpu.memory_space<vmem>>, vector<1x16x384xbf16>
    %1 = vector.shape_cast %0 : vector<1x16x384xbf16> to vector<16x384xbf16>
    %c0_2 = arith.constant 0 : index
    %c0_3 = arith.constant 0 : index
    %2 = vector.load %arg5[%c0_2, %c0_3] : memref<144x768xbf16, #tpu.memory_space<vmem>>, vector<16x384xbf16>
    tpu.vector_store %arg5[%c0_2, %c0_3], %1 {strides = array<i32>} : memref<144x768xbf16, #tpu.memory_space<vmem>>, vector<16x384xbf16>,
    %c0_4 = arith.constant 0 : index
    %c0_5 = arith.constant 0 : index
    %c1 = arith.constant 1 : index
    %3 = vector.load %arg1[%c0_4, %c0_5, %c1] : memref<2x16x432xbf16, #tpu.memory_space<vmem>>, vector<1x16x384xbf16>
    %4 = vector.shape_cast %3 : vector<1x16x384xbf16> to vector<16x384xbf16>
    %c16 = arith.constant 16 : index
    %c0_6 = arith.constant 0 : index
    %5 = vector.load %arg5[%c16, %c0_6] : memref<144x768xbf16, #tpu.memory_space<vmem>>, vector<16x384xbf16>
    tpu.vector_store %arg5[%c16, %c0_6], %4 {strides = array<i32>} : memref<144x768xbf16, #tpu.memory_space<vmem>>, vector<16x384xbf16>,
    %c0_7 = arith.constant 0 : index
    %c0_8 = arith.constant 0 : index
    %c2 = arith.constant 2 : index
    %6 = vector.load %arg1[%c0_7, %c0_8, %c2] : memref<2x16x432xbf16, #tpu.memory_space<vmem>>, vector<1x16x384xbf16>
    %7 = vector.shape_cast %6 : vector<1x16x384xbf16> to vector<16x384xbf16>
    %c32 = arith.constant 32 : index
    %c0_9 = arith.constant 0 : index
    %8 = vector.load %arg5[%c32, %c0_9] : memref<144x768xbf16, #tpu.memory_space<vmem>>, vector<16x384xbf16>
    tpu.vector_store %arg5[%c32, %c0_9], %7 {strides = array<i32>} : memref<144x768xbf16, #tpu.memory_space<vmem>>, vector<16x384xbf16>,
    %c0_10 = arith.constant 0 : index
    %c0_11 = arith.constant 0 : index
    %c18 = arith.constant 18 : index
    %9 = vector.load %arg1[%c0_10, %c0_11, %c18] : memref<2x16x432xbf16, #tpu.memory_space<vmem>>, vector<1x16x384xbf16>
    %10 = vector.shape_cast %9 : vector<1x16x384xbf16> to vector<16x384xbf16>
    %c48 = arith.constant 48 : index
    %c0_12 = arith.constant 0 : index
    %11 = vector.load %arg5[%c48, %c0_12] : memref<144x768xbf16, #tpu.memory_space<vmem>>, vector<16x384xbf16>
    tpu.vector_store %arg5[%c48, %c0_12], %10 {strides = array<i32>} : memref<144x768xbf16, #tpu.memory_space<vmem>>, vector<16x384xbf16>,
    %c0_13 = arith.constant 0 : index
    %c0_14 = arith.constant 0 : index
    %c19 = arith.constant 19 : index
    %12 = vector.load %arg1[%c0_13, %c0_14, %c19] : memref<2x16x432xbf16, #tpu.memory_space<vmem>>, vector<1x16x384xbf16>
    %13 = vector.shape_cast %12 : vector<1x16x384xbf16> to vector<16x384xbf16>
    %c64 = arith.constant 64 : index
    %c0_15 = arith.constant 0 : index
    %14 = vector.load %arg5[%c64, %c0_15] : memref<144x768xbf16, #tpu.memory_space<vmem>>, vector<16x384xbf16>
    tpu.vector_store %arg5[%c64, %c0_15], %13 {strides = array<i32>} : memref<144x768xbf16, #tpu.memory_space<vmem>>, vector<16x384xbf16>,
    %c0_16 = arith.constant 0 : index
    %c0_17 = arith.constant 0 : index
    %c20 = arith.constant 20 : index
    %15 = vector.load %arg1[%c0_16, %c0_17, %c20] : memref<2x16x432xbf16, #tpu.memory_space<vmem>>, vector<1x16x384xbf16>
    %16 = vector.shape_cast %15 : vector<1x16x384xbf16> to vector<16x384xbf16>
    %c80 = arith.constant 80 : index
    %c0_18 = arith.constant 0 : index
    %17 = vector.load %arg5[%c80, %c0_18] : memref<144x768xbf16, #tpu.memory_space<vmem>>, vector<16x384xbf16>
    tpu.vector_store %arg5[%c80, %c0_18], %16 {strides = array<i32>} : memref<144x768xbf16, #tpu.memory_space<vmem>>, vector<16x384xbf16>,
    %c0_19 = arith.constant 0 : index
    %c0_20 = arith.constant 0 : index
    %c36 = arith.constant 36 : index
    %18 = vector.load %arg1[%c0_19, %c0_20, %c36] : memref<2x16x432xbf16, #tpu.memory_space<vmem>>, vector<1x16x384xbf16>
    %19 = vector.shape_cast %18 : vector<1x16x384xbf16> to vector<16x384xbf16>
    %c96 = arith.constant 96 : index
    %c0_21 = arith.constant 0 : index
    %20 = vector.load %arg5[%c96, %c0_21] : memref<144x768xbf16, #tpu.memory_space<vmem>>, vector<16x384xbf16>
    tpu.vector_store %arg5[%c96, %c0_21], %19 {strides = array<i32>} : memref<144x768xbf16, #tpu.memory_space<vmem>>, vector<16x384xbf16>,
    %c0_22 = arith.constant 0 : index
    %c0_23 = arith.constant 0 : index
    %c37 = arith.constant 37 : index
    %21 = vector.load %arg1[%c0_22, %c0_23, %c37] : memref<2x16x432xbf16, #tpu.memory_space<vmem>>, vector<1x16x384xbf16>
    %22 = vector.shape_cast %21 : vector<1x16x384xbf16> to vector<16x384xbf16>
    %c112 = arith.constant 112 : index
    %c0_24 = arith.constant 0 : index
    %23 = vector.load %arg5[%c112, %c0_24] : memref<144x768xbf16, #tpu.memory_space<vmem>>, vector<16x384xbf16>
    tpu.vector_store %arg5[%c112, %c0_24], %22 {strides = array<i32>} : memref<144x768xbf16, #tpu.memory_space<vmem>>, vector<16x384xbf16>,
    %c0_25 = arith.constant 0 : index
    %c0_26 = arith.constant 0 : index
    %c38 = arith.constant 38 : index
    %24 = vector.load %arg1[%c0_25, %c0_26, %c38] : memref<2x16x432xbf16, #tpu.memory_space<vmem>>, vector<1x16x384xbf16>
    %25 = vector.shape_cast %24 : vector<1x16x384xbf16> to vector<16x384xbf16>
    %c128 = arith.constant 128 : index
    %c0_27 = arith.constant 0 : index
    %26 = vector.load %arg5[%c128, %c0_27] : memref<144x768xbf16, #tpu.memory_space<vmem>>, vector<16x384xbf16>
    tpu.vector_store %arg5[%c128, %c0_27], %25 {strides = array<i32>} : memref<144x768xbf16, #tpu.memory_space<vmem>>, vector<16x384xbf16>,
    %c1_28 = arith.constant 1 : index
    %c0_29 = arith.constant 0 : index
    %c0_30 = arith.constant 0 : index
    %27 = vector.load %arg1[%c1_28, %c0_29, %c0_30] : memref<2x16x432xbf16, #tpu.memory_space<vmem>>, vector<1x16x384xbf16>
    %28 = vector.shape_cast %27 : vector<1x16x384xbf16> to vector<16x384xbf16>
    %c0_31 = arith.constant 0 : index
    %c384 = arith.constant 384 : index
    %29 = vector.load %arg5[%c0_31, %c384] : memref<144x768xbf16, #tpu.memory_space<vmem>>, vector<16x384xbf16>
    tpu.vector_store %arg5[%c0_31, %c384], %28 {strides = array<i32>} : memref<144x768xbf16, #tpu.memory_space<vmem>>, vector<16x384xbf16>,
    %c1_32 = arith.constant 1 : index
    %c0_33 = arith.constant 0 : index
    %c1_34 = arith.constant 1 : index
    %30 = vector.load %arg1[%c1_32, %c0_33, %c1_34] : memref<2x16x432xbf16, #tpu.memory_space<vmem>>, vector<1x16x384xbf16>
    %31 = vector.shape_cast %30 : vector<1x16x384xbf16> to vector<16x384xbf16>
    %c16_35 = arith.constant 16 : index
    %c384_36 = arith.constant 384 : index
    %32 = vector.load %arg5[%c16_35, %c384_36] : memref<144x768xbf16, #tpu.memory_space<vmem>>, vector<16x384xbf16>
    tpu.vector_store %arg5[%c16_35, %c384_36], %31 {strides = array<i32>} : memref<144x768xbf16, #tpu.memory_space<vmem>>, vector<16x384xbf16>,
    %c1_37 = arith.constant 1 : index
    %c0_38 = arith.constant 0 : index
    %c2_39 = arith.constant 2 : index
    %33 = vector.load %arg1[%c1_37, %c0_38, %c2_39] : memref<2x16x432xbf16, #tpu.memory_space<vmem>>, vector<1x16x384xbf16>
    %34 = vector.shape_cast %33 : vector<1x16x384xbf16> to vector<16x384xbf16>
    %c32_40 = arith.constant 32 : index
    %c384_41 = arith.constant 384 : index
    %35 = vector.load %arg5[%c32_40, %c384_41] : memref<144x768xbf16, #tpu.memory_space<vmem>>, vector<16x384xbf16>
    tpu.vector_store %arg5[%c32_40, %c384_41], %34 {strides = array<i32>} : memref<144x768xbf16, #tpu.memory_space<vmem>>, vector<16x384xbf16>,
    %c1_42 = arith.constant 1 : index
    %c0_43 = arith.constant 0 : index
    %c18_44 = arith.constant 18 : index
    %36 = vector.load %arg1[%c1_42, %c0_43, %c18_44] : memref<2x16x432xbf16, #tpu.memory_space<vmem>>, vector<1x16x384xbf16>
    %37 = vector.shape_cast %36 : vector<1x16x384xbf16> to vector<16x384xbf16>
    %c48_45 = arith.constant 48 : index
    %c384_46 = arith.constant 384 : index
    %38 = vector.load %arg5[%c48_45, %c384_46] : memref<144x768xbf16, #tpu.memory_space<vmem>>, vector<16x384xbf16>
    tpu.vector_store %arg5[%c48_45, %c384_46], %37 {strides = array<i32>} : memref<144x768xbf16, #tpu.memory_space<vmem>>, vector<16x384xbf16>,
    %c1_47 = arith.constant 1 : index
    %c0_48 = arith.constant 0 : index
    %c19_49 = arith.constant 19 : index
    %39 = vector.load %arg1[%c1_47, %c0_48, %c19_49] : memref<2x16x432xbf16, #tpu.memory_space<vmem>>, vector<1x16x384xbf16>
    %40 = vector.shape_cast %39 : vector<1x16x384xbf16> to vector<16x384xbf16>
    %c64_50 = arith.constant 64 : index
    %c384_51 = arith.constant 384 : index
    %41 = vector.load %arg5[%c64_50, %c384_51] : memref<144x768xbf16, #tpu.memory_space<vmem>>, vector<16x384xbf16>
    tpu.vector_store %arg5[%c64_50, %c384_51], %40 {strides = array<i32>} : memref<144x768xbf16, #tpu.memory_space<vmem>>, vector<16x384xbf16>,
    %c1_52 = arith.constant 1 : index
    %c0_53 = arith.constant 0 : index
    %c20_54 = arith.constant 20 : index
    %42 = vector.load %arg1[%c1_52, %c0_53, %c20_54] : memref<2x16x432xbf16, #tpu.memory_space<vmem>>, vector<1x16x384xbf16>
    %43 = vector.shape_cast %42 : vector<1x16x384xbf16> to vector<16x384xbf16>
    %c80_55 = arith.constant 80 : index
    %c384_56 = arith.constant 384 : index
    %44 = vector.load %arg5[%c80_55, %c384_56] : memref<144x768xbf16, #tpu.memory_space<vmem>>, vector<16x384xbf16>
    tpu.vector_store %arg5[%c80_55, %c384_56], %43 {strides = array<i32>} : memref<144x768xbf16, #tpu.memory_space<vmem>>, vector<16x384xbf16>,
    %c1_57 = arith.constant 1 : index
    %c0_58 = arith.constant 0 : index
    %c36_59 = arith.constant 36 : index
    %45 = vector.load %arg1[%c1_57, %c0_58, %c36_59] : memref<2x16x432xbf16, #tpu.memory_space<vmem>>, vector<1x16x384xbf16>
    %46 = vector.shape_cast %45 : vector<1x16x384xbf16> to vector<16x384xbf16>
    %c96_60 = arith.constant 96 : index
    %c384_61 = arith.constant 384 : index
    %47 = vector.load %arg5[%c96_60, %c384_61] : memref<144x768xbf16, #tpu.memory_space<vmem>>, vector<16x384xbf16>
    tpu.vector_store %arg5[%c96_60, %c384_61], %46 {strides = array<i32>} : memref<144x768xbf16, #tpu.memory_space<vmem>>, vector<16x384xbf16>,
    %c1_62 = arith.constant 1 : index
    %c0_63 = arith.constant 0 : index
    %c37_64 = arith.constant 37 : index
    %48 = vector.load %arg1[%c1_62, %c0_63, %c37_64] : memref<2x16x432xbf16, #tpu.memory_space<vmem>>, vector<1x16x384xbf16>
    %49 = vector.shape_cast %48 : vector<1x16x384xbf16> to vector<16x384xbf16>
    %c112_65 = arith.constant 112 : index
    %c384_66 = arith.constant 384 : index
    %50 = vector.load %arg5[%c112_65, %c384_66] : memref<144x768xbf16, #tpu.memory_space<vmem>>, vector<16x384xbf16>
    tpu.vector_store %arg5[%c112_65, %c384_66], %49 {strides = array<i32>} : memref<144x768xbf16, #tpu.memory_space<vmem>>, vector<16x384xbf16>,
    %c1_67 = arith.constant 1 : index
    %c0_68 = arith.constant 0 : index
    %c38_69 = arith.constant 38 : index
    %51 = vector.load %arg1[%c1_67, %c0_68, %c38_69] : memref<2x16x432xbf16, #tpu.memory_space<vmem>>, vector<1x16x384xbf16>
    %52 = vector.shape_cast %51 : vector<1x16x384xbf16> to vector<16x384xbf16>
    %c128_70 = arith.constant 128 : index
    %c384_71 = arith.constant 384 : index
    %53 = vector.load %arg5[%c128_70, %c384_71] : memref<144x768xbf16, #tpu.memory_space<vmem>>, vector<16x384xbf16>
    tpu.vector_store %arg5[%c128_70, %c384_71], %52 {strides = array<i32>} : memref<144x768xbf16, #tpu.memory_space<vmem>>, vector<16x384xbf16>,
    %c0_72 = arith.constant 0 : index
    %c0_73 = arith.constant 0 : index
    %54 = vector.load %arg2[%c0_72, %c0_73] : memref<8x144xbf16, #tpu.memory_space<vmem>>, vector<8x144xbf16>
    %c0_74 = arith.constant 0 : index
    %c0_75 = arith.constant 0 : index
    %55 = vector.load %arg5[%c0_74, %c0_75] : memref<144x768xbf16, #tpu.memory_space<vmem>>, vector<144x768xbf16>
    %cst = arith.constant dense<0.000000e+00> : vector<8x768xf32>
    %56 = tpu.matmul %54, %55, %cst {dimension_numbers = #tpu.dot_dimension_numbers<[1], [0], [0], [1], [0, 0, 1, 1], [], []>} : vector<8x144xbf16>, vector<144x768xbf16>, vector<8x768xf32> -> vector<8x768xf32>
    %c0_76 = arith.constant 0 : index
    %c0_77 = arith.constant 0 : index
    %57 = vector.load %arg3[%c0_76, %c0_77] : memref<8x1xf32, #tpu.memory_space<vmem>>, vector<8x1xf32>
    %58 = vector.broadcast %57 : vector<8x1xf32> to vector<8x768xf32>
    %59 = arith.addf %56, %58 : vector<8x768xf32>
    %cst_78 = arith.constant 0.000000e+00 : f32
    %60 = vector.broadcast %cst_78 : f32 to vector<8x768xf32>
    %61 = arith.subf %60, %59 : vector<8x768xf32>
    %62 = math.exp %61 : vector<8x768xf32>
    %cst_79 = arith.constant 1.000000e+00 : f32
    %63 = vector.broadcast %cst_79 : f32 to vector<8x768xf32>
    %64 = arith.addf %63, %62 : vector<8x768xf32>
    %65 = tpu.reciprocal %64 {approx = true} : vector<8x768xf32> -> vector<8x768xf32>
    %66 = arith.mulf %64, %65 : vector<8x768xf32>
    %cst_80 = arith.constant 2.000000e+00 : f32
    %67 = vector.broadcast %cst_80 : f32 to vector<8x768xf32>
    %68 = arith.subf %67, %66 : vector<8x768xf32>
    %69 = arith.mulf %65, %68 : vector<8x768xf32>
    %70 = arith.mulf %59, %69 : vector<8x768xf32>
    %71 = vector.extract_strided_slice %70 {offsets = [0, 0], sizes = [8, 384], strides = [1, 1]} : vector<8x768xf32> to vector<8x384xf32>
    %c0_81 = arith.constant 0 : index
    %c0_82 = arith.constant 0 : index
    %c0_83 = arith.constant 0 : index
    %72 = vector.load %arg4[%c0_81, %c0_82, %c0_83] : memref<2x8x384xf32, #tpu.memory_space<vmem>>, vector<1x8x384xf32>
    %73 = vector.shape_cast %72 : vector<1x8x384xf32> to vector<8x384xf32>
    %74 = vector.shape_cast %71 : vector<8x384xf32> to vector<1x8x384xf32>
    tpu.vector_store %arg4[%c0_81, %c0_82, %c0_83], %74 {strides = array<i32>} : memref<2x8x384xf32, #tpu.memory_space<vmem>>, vector<1x8x384xf32>,
    %75 = vector.extract_strided_slice %70 {offsets = [0, 384], sizes = [8, 384], strides = [1, 1]} : vector<8x768xf32> to vector<8x384xf32>
    %c1_84 = arith.constant 1 : index
    %c0_85 = arith.constant 0 : index
    %c0_86 = arith.constant 0 : index
    %76 = vector.load %arg4[%c1_84, %c0_85, %c0_86] : memref<2x8x384xf32, #tpu.memory_space<vmem>>, vector<1x8x384xf32>
    %77 = vector.shape_cast %76 : vector<1x8x384xf32> to vector<8x384xf32>
    %78 = vector.shape_cast %75 : vector<8x384xf32> to vector<1x8x384xf32>
    tpu.vector_store %arg4[%c1_84, %c0_85, %c0_86], %78 {strides = array<i32>} : memref<2x8x384xf32, #tpu.memory_space<vmem>>, vector<1x8x384xf32>,
    return
  }
  func.func @transform_0(%arg0: i32) -> (i32, i32, i32) {
    %c0_i32 = arith.constant 0 : i32
    %c0_i32_0 = arith.constant 0 : i32
    %c0_i32_1 = arith.constant 0 : i32
    %c0_i32_2 = arith.constant 0 : i32
    return %c0_i32, %c0_i32_0, %c0_i32_1 : i32, i32, i32
  }
  func.func @transform_1(%arg0: i32) -> (i32, i32) {
    %c0_i32 = arith.constant 0 : i32
    %c0_i32_0 = arith.constant 0 : i32
    %c0_i32_1 = arith.constant 0 : i32
    return %c0_i32, %c0_i32_0 : i32, i32
  }
  func.func @transform_2(%arg0: i32) -> (i32, i32) {
    %c0_i32 = arith.constant 0 : i32
    %c0_i32_0 = arith.constant 0 : i32
    %c0_i32_1 = arith.constant 0 : i32
    return %c0_i32, %c0_i32_0 : i32, i32
  }
  func.func @transform_3(%arg0: i32) -> (i32, i32, i32) {
    %c0_i32 = arith.constant 0 : i32
    %c0_i32_0 = arith.constant 0 : i32
    %c0_i32_1 = arith.constant 0 : i32
    %c0_i32_2 = arith.constant 0 : i32
    return %c0_i32, %c0_i32_0, %c0_i32_1 : i32, i32, i32
  }
}

</mosaic_0001>

<llo_original>
// kernel: conv_silu.1
$region0: #{conv_silu.1}
  #allocation0 [shape = 'u32[]', space=smem, size = 0x4, offset = 0x4, fixed_abs, tag = 'smem constant byte address 0x4 - core index']
  #allocation1 [shape = 'u32[72,128]{1,0:T(1,128)}', space=vmem, size = 0x9000, scoped, tag = 'internal scratch']
  #allocation2 [shape = 'bf16[144,768]{1,0:T(8,128)(2,1)}', space=vmem, size = 0x36000, scoped, tag = 'scratch operand']
  %s0 = inlined_call_operand.vmem [shape: bf16[2,16,432], index: 0, kind: input, shape index: {}]
  %s1 = inlined_call_operand.vmem [shape: bf16[8,144], index: 1, kind: input, shape index: {}]
  %s2 = inlined_call_operand.vmem [shape: f32[8,1], index: 2, kind: input, shape index: {}]
  %s3 = inlined_call_operand.vmem [shape: f32[2,8,384], index: 3, kind: output, shape index: {}]
  %s4 = sld [smem:[#allocation0]]
  $region22: #{conv_silu.1} parent=0
    _
  %s6 = ssub.s32 1, %s4
  %s7 = scalar_select 0, %s6, %s4
  // Predicated region
  $region2: #{conv_silu.1} parent=0 // pred_check
    _
  $region3: #{conv_silu.1} parent=0 // pred_check_branch
    %9 = sbr.rel (0) target = $region5
  $region4: #{conv_silu.1} parent=0 // pred_region
    _
  $region5: #{conv_silu.1} parent=0 // pred_fallthru
    _
  // Predicated region
  $region6: #{conv_silu.1} parent=0 // pred_check
    _
  $region7: #{conv_silu.1} parent=0 // pred_check_branch
    %11 = sbr.rel (0) target = $region9
  $region8: #{conv_silu.1} parent=0 // pred_region
    _
  $region9: #{conv_silu.1} parent=0 // pred_fallthru
    _
  // Predicated region
  $region10: #{conv_silu.1} parent=0 // pred_check
    _
  $region11: #{conv_silu.1} parent=0 // pred_check_branch
    %13 = sbr.rel (0) target = $region13
  $region12: #{conv_silu.1} parent=0 // pred_region
    _
  $region13: #{conv_silu.1} parent=0 // pred_fallthru
    _
  %v15 = vld [vmem:[%s0] sm:$0xff]
  %v16 = vld [vmem:[%s0 + $0x8] sm:$0xf]
  %v17 = vld [vmem:[%s0 + $0x10] sm:$0xff]
  %v18 = vld [vmem:[%s0 + $0x18] sm:$0xf]
  %19 = vst [vmem:[#allocation2] sm:$0xff] %v15
  %20 = vst [vmem:[#allocation2 + $0x8] sm:$0xf] %v16
  %21 = vst [vmem:[#allocation2 + $0x18] sm:$0xff] %v17
  %22 = vst [vmem:[#allocation2 + $0x20] sm:$0xf] %v18
  %v23 = vld [vmem:[%s0] sm:$0xff]
  %v24 = vld [vmem:[%s0 + $0x8] sm:$0xff]
  %v25 = vld [vmem:[%s0 + $0x10] sm:$0xff]
  %v26 = vld [vmem:[%s0 + $0x18] sm:$0xff]
  %31 = vrot.lane.b32.xlu0 %v23, 127
  %v32 = vpop.permute.xlu0 %31
  %33 = vrot.lane.b32.xlu0 %v24, 127
  %v34 = vpop.permute.xlu0 %33
  %35 = vrot.lane.b32.xlu0 %v25, 127
  %v36 = vpop.permute.xlu0 %35
  %37 = vrot.lane.b32.xlu0 %v26, 127
  %v38 = vpop.permute.xlu0 %37
  %v39 = vrot.slane %v32, 4
  %v40 = vrot.slane %v34, 4
  %v41 = vrot.slane %v36, 4
  %v42 = vrot.slane %v38, 4
  %vm43 = vcmask 1043456
  %v44 = vsel %vm43, %v39, %v40
  %vm45 = vcmask 1039360
  %v46 = vsel %vm45, %v32, %v44
  %v47 = vsel %vm45, %v34, %v40
  %v48 = vsel %vm43, %v41, %v42
  %v49 = vsel %vm45, %v36, %v48
  %v50 = vsel %vm45, %v38, %v42
  %55 = vst [vmem:[#allocation2 + $0x30] sm:$0xff] %v46
  %56 = vst [vmem:[#allocation2 + $0x38] sm:$0xf] %v47
  %57 = vst [vmem:[#allocation2 + $0x48] sm:$0xff] %v49
  %58 = vst [vmem:[#allocation2 + $0x50] sm:$0xf] %v50
  %v59 = vld [vmem:[%s0] sm:$0xff]
  %v60 = vld [vmem:[%s0 + $0x8] sm:$0xff]
  %v61 = vld [vmem:[%s0 + $0x10] sm:$0xff]
  %v62 = vld [vmem:[%s0 + $0x18] sm:$0xff]
  %67 = vrot.lane.b32.xlu0 %v59, 126
  %v68 = vpop.permute.xlu0 %67
  %69 = vrot.lane.b32.xlu0 %v60, 126
  %v70 = vpop.permute.xlu0 %69
  %71 = vrot.lane.b32.xlu0 %v61, 126
  %v72 = vpop.permute.xlu0 %71
  %73 = vrot.lane.b32.xlu0 %v62, 126
  %v74 = vpop.permute.xlu0 %73
  %v75 = vrot.slane %v68, 4
  %v76 = vrot.slane %v70, 4
  %v77 = vrot.slane %v72, 4
  %v78 = vrot.slane %v74, 4
  %v79 = vsel %vm43, %v75, %v76
  %vm80 = vcmask 1031168
  %v81 = vsel %vm80, %v68, %v79
  %v82 = vsel %vm80, %v70, %v76
  %v83 = vsel %vm43, %v77, %v78
  %v84 = vsel %vm80, %v72, %v83
  %v85 = vsel %vm80, %v74, %v78
  %90 = vst [vmem:[#allocation2 + $0x60] sm:$0xff] %v81
  %91 = vst [vmem:[#allocation2 + $0x68] sm:$0xf] %v82
  %92 = vst [vmem:[#allocation2 + $0x78] sm:$0xff] %v84
  %93 = vst [vmem:[#allocation2 + $0x80] sm:$0xf] %v85
  %v94 = vld [vmem:[%s0] sm:$0xff]
  %v95 = vld [vmem:[%s0 + $0x8] sm:$0xff]
  %v96 = vld [vmem:[%s0 + $0x10] sm:$0xff]
  %v97 = vld [vmem:[%s0 + $0x18] sm:$0xff]
  %102 = vrot.lane.b32.xlu0 %v94, 110
  %v103 = vpop.permute.xlu0 %102
  %104 = vrot.lane.b32.xlu0 %v95, 110
  %v105 = vpop.permute.xlu0 %104
  %106 = vrot.lane.b32.xlu0 %v96, 110
  %v107 = vpop.permute.xlu0 %106
  %108 = vrot.lane.b32.xlu0 %v97, 110
  %v109 = vpop.permute.xlu0 %108
  %v110 = vrot.slane %v103, 4
  %v111 = vrot.slane %v105, 4
  %v112 = vrot.slane %v107, 4
  %v113 = vrot.slane %v109, 4
  %v114 = vsel %vm43, %v110, %v111
  %vm115 = vcmask 900096
  %v116 = vsel %vm115, %v103, %v114
  %v117 = vsel %vm115, %v105, %v111
  %v118 = vsel %vm43, %v112, %v113
  %v119 = vsel %vm115, %v107, %v118
  %v120 = vsel %vm115, %v109, %v113
  %125 = vst [vmem:[#allocation2 + $0x90] sm:$0xff] %v116
  %126 = vst [vmem:[#allocation2 + $0x98] sm:$0xf] %v117
  %127 = vst [vmem:[#allocation2 + $0xa8] sm:$0xff] %v119
  %128 = vst [vmem:[#allocation2 + $0xb0] sm:$0xf] %v120
  %v129 = vld [vmem:[%s0] sm:$0xff]
  %v130 = vld [vmem:[%s0 + $0x8] sm:$0xff]
  %v131 = vld [vmem:[%s0 + $0x10] sm:$0xff]
  %v132 = vld [vmem:[%s0 + $0x18] sm:$0xff]
  %137 = vrot.lane.b32.xlu0 %v129, 109
  %v138 = vpop.permute.xlu0 %137
  %139 = vrot.lane.b32.xlu0 %v130, 109
  %v140 = vpop.permute.xlu0 %139
  %141 = vrot.lane.b32.xlu0 %v131, 109
  %v142 = vpop.permute.xlu0 %141
  %143 = vrot.lane.b32.xlu0 %v132, 109
  %v144 = vpop.permute.xlu0 %143
  %v145 = vrot.slane %v138, 4
  %v146 = vrot.slane %v140, 4
  %v147 = vrot.slane %v142, 4
  %v148 = vrot.slane %v144, 4
  %v149 = vsel %vm43, %v145, %v146
  %vm150 = vcmask 891904
  %v151 = vsel %vm150, %v138, %v149
  %v152 = vsel %vm150, %v140, %v146
  %v153 = vsel %vm43, %v147, %v148
  %v154 = vsel %vm150, %v142, %v153
  %v155 = vsel %vm150, %v144, %v148
  %160 = vst [vmem:[#allocation2 + $0xc0] sm:$0xff] %v151
  %161 = vst [vmem:[#allocation2 + $0xc8] sm:$0xf] %v152
  %162 = vst [vmem:[#allocation2 + $0xd8] sm:$0xff] %v154
  %163 = vst [vmem:[#allocation2 + $0xe0] sm:$0xf] %v155
  %v164 = vld [vmem:[%s0] sm:$0xff]
  %v165 = vld [vmem:[%s0 + $0x8] sm:$0xff]
  %v166 = vld [vmem:[%s0 + $0x10] sm:$0xff]
  %v167 = vld [vmem:[%s0 + $0x18] sm:$0xff]
  %172 = vrot.lane.b32.xlu0 %v164, 108
  %v173 = vpop.permute.xlu0 %172
  %174 = vrot.lane.b32.xlu0 %v165, 108
  %v175 = vpop.permute.xlu0 %174
  %176 = vrot.lane.b32.xlu0 %v166, 108
  %v177 = vpop.permute.xlu0 %176
  %178 = vrot.lane.b32.xlu0 %v167, 108
  %v179 = vpop.permute.xlu0 %178
  %v180 = vrot.slane %v173, 4
  %v181 = vrot.slane %v175, 4
  %v182 = vrot.slane %v177, 4
  %v183 = vrot.slane %v179, 4
  %v184 = vsel %vm43, %v180, %v181
  %vm185 = vcmask 883712
  %v186 = vsel %vm185, %v173, %v184
  %v187 = vsel %vm185, %v175, %v181
  %v188 = vsel %vm43, %v182, %v183
  %v189 = vsel %vm185, %v177, %v188
  %v190 = vsel %vm185, %v179, %v183
  %195 = vst [vmem:[#allocation2 + $0xf0] sm:$0xff] %v186
  %196 = vst [vmem:[#allocation2 + $0xf8] sm:$0xf] %v187
  %197 = vst [vmem:[#allocation2 + $0x108] sm:$0xff] %v189
  %198 = vst [vmem:[#allocation2 + $0x110] sm:$0xf] %v190
  %v199 = vld [vmem:[%s0] sm:$0xff]
  %v200 = vld [vmem:[%s0 + $0x8] sm:$0xff]
  %v201 = vld [vmem:[%s0 + $0x10] sm:$0xff]
  %v202 = vld [vmem:[%s0 + $0x18] sm:$0xff]
  %207 = vrot.lane.b32.xlu0 %v199, 92
  %v208 = vpop.permute.xlu0 %207
  %209 = vrot.lane.b32.xlu0 %v200, 92
  %v210 = vpop.permute.xlu0 %209
  %211 = vrot.lane.b32.xlu0 %v201, 92
  %v212 = vpop.permute.xlu0 %211
  %213 = vrot.lane.b32.xlu0 %v202, 92
  %v214 = vpop.permute.xlu0 %213
  %v215 = vrot.slane %v208, 4
  %v216 = vrot.slane %v210, 4
  %v217 = vrot.slane %v212, 4
  %v218 = vrot.slane %v214, 4
  %v219 = vsel %vm43, %v215, %v216
  %vm220 = vcmask 752640
  %v221 = vsel %vm220, %v208, %v219
  %v222 = vsel %vm220, %v210, %v216
  %v223 = vsel %vm43, %v217, %v218
  %v224 = vsel %vm220, %v212, %v223
  %v225 = vsel %vm220, %v214, %v218
  %230 = vst [vmem:[#allocation2 + $0x120] sm:$0xff] %v221
  %231 = vst [vmem:[#allocation2 + $0x128] sm:$0xf] %v222
  %232 = vst [vmem:[#allocation2 + $0x138] sm:$0xff] %v224
  %233 = vst [vmem:[#allocation2 + $0x140] sm:$0xf] %v225
  %v234 = vld [vmem:[%s0] sm:$0xff]
  %v235 = vld [vmem:[%s0 + $0x8] sm:$0xff]
  %v236 = vld [vmem:[%s0 + $0x10] sm:$0xff]
  %v237 = vld [vmem:[%s0 + $0x18] sm:$0xff]
  %242 = vrot.lane.b32.xlu0 %v234, 91
  %v243 = vpop.permute.xlu0 %242
  %244 = vrot.lane.b32.xlu0 %v235, 91
  %v245 = vpop.permute.xlu0 %244
  %246 = vrot.lane.b32.xlu0 %v236, 91
  %v247 = vpop.permute.xlu0 %246
  %248 = vrot.lane.b32.xlu0 %v237, 91
  %v249 = vpop.permute.xlu0 %248
  %v250 = vrot.slane %v243, 4
  %v251 = vrot.slane %v245, 4
  %v252 = vrot.slane %v247, 4
  %v253 = vrot.slane %v249, 4
  %v254 = vsel %vm43, %v250, %v251
  %vm255 = vcmask 744448
  %v256 = vsel %vm255, %v243, %v254
  %v257 = vsel %vm255, %v245, %v251
  %v258 = vsel %vm43, %v252, %v253
  %v259 = vsel %vm255, %v247, %v258
  %v260 = vsel %vm255, %v249, %v253
  %265 = vst [vmem:[#allocation2 + $0x150] sm:$0xff] %v256
  %266 = vst [vmem:[#allocation2 + $0x158] sm:$0xf] %v257
  %267 = vst [vmem:[#allocation2 + $0x168] sm:$0xff] %v259
  %268 = vst [vmem:[#allocation2 + $0x170] sm:$0xf] %v260
  %v269 = vld [vmem:[%s0] sm:$0xff]
  %v270 = vld [vmem:[%s0 + $0x8] sm:$0xff]
  %v271 = vld [vmem:[%s0 + $0x10] sm:$0xff]
  %v272 = vld [vmem:[%s0 + $0x18] sm:$0xff]
  %277 = vrot.lane.b32.xlu0 %v269, 90
  %v278 = vpop.permute.xlu0 %277
  %279 = vrot.lane.b32.xlu0 %v270, 90
  %v280 = vpop.permute.xlu0 %279
  %281 = vrot.lane.b32.xlu0 %v271, 90
  %v282 = vpop.permute.xlu0 %281
  %283 = vrot.lane.b32.xlu0 %v272, 90
  %v284 = vpop.permute.xlu0 %283
  %v285 = vrot.slane %v278, 4
  %v286 = vrot.slane %v280, 4
  %v287 = vrot.slane %v282, 4
  %v288 = vrot.slane %v284, 4
  %v289 = vsel %vm43, %v285, %v286
  %vm290 = vcmask 736256
  %v291 = vsel %vm290, %v278, %v289
  %v292 = vsel %vm290, %v280, %v286
  %v293 = vsel %vm43, %v287, %v288
  %v294 = vsel %vm290, %v282, %v293
  %v295 = vsel %vm290, %v284, %v288
  %300 = vst [vmem:[#allocation2 + $0x180] sm:$0xff] %v291
  %301 = vst [vmem:[#allocation2 + $0x188] sm:$0xf] %v292
  %302 = vst [vmem:[#allocation2 + $0x198] sm:$0xff] %v294
  %303 = vst [vmem:[#allocation2 + $0x1a0] sm:$0xf] %v295
  %s304 = scalar_lea.vmem %s0, 32
  %v305 = vld [vmem:[%s304] sm:$0xff]
  %v306 = vld [vmem:[%s304 + $0x8] sm:$0xf]
  %v307 = vld [vmem:[%s304 + $0x10] sm:$0xff]
  %v308 = vld [vmem:[%s304 + $0x18] sm:$0xf]
  %309 = vst [vmem:[#allocation2 + $0xc] sm:$0xff] %v305
  %310 = vst [vmem:[#allocation2 + $0x14] sm:$0xf] %v306
  %311 = vst [vmem:[#allocation2 + $0x24] sm:$0xff] %v307
  %312 = vst [vmem:[#allocation2 + $0x2c] sm:$0xf] %v308
  %v313 = vld [vmem:[%s304] sm:$0xff]
  %v314 = vld [vmem:[%s304 + $0x8] sm:$0xff]
  %v315 = vld [vmem:[%s304 + $0x10] sm:$0xff]
  %v316 = vld [vmem:[%s304 + $0x18] sm:$0xff]
  %321 = vrot.lane.b32.xlu0 %v313, 127
  %v322 = vpop.permute.xlu0 %321
  %323 = vrot.lane.b32.xlu0 %v314, 127
  %v324 = vpop.permute.xlu0 %323
  %325 = vrot.lane.b32.xlu0 %v315, 127
  %v326 = vpop.permute.xlu0 %325
  %327 = vrot.lane.b32.xlu0 %v316, 127
  %v328 = vpop.permute.xlu0 %327
  %v329 = vrot.slane %v322, 4
  %v330 = vrot.slane %v324, 4
  %v331 = vrot.slane %v326, 4
  %v332 = vrot.slane %v328, 4
  %v333 = vsel %vm43, %v329, %v330
  %v334 = vsel %vm45, %v322, %v333
  %v335 = vsel %vm45, %v324, %v330
  %v336 = vsel %vm43, %v331, %v332
  %v337 = vsel %vm45, %v326, %v336
  %v338 = vsel %vm45, %v328, %v332
  %343 = vst [vmem:[#allocation2 + $0x3c] sm:$0xff] %v334
  %344 = vst [vmem:[#allocation2 + $0x44] sm:$0xf] %v335
  %345 = vst [vmem:[#allocation2 + $0x54] sm:$0xff] %v337
  %346 = vst [vmem:[#allocation2 + $0x5c] sm:$0xf] %v338
  %v347 = vld [vmem:[%s304] sm:$0xff]
  %v348 = vld [vmem:[%s304 + $0x8] sm:$0xff]
  %v349 = vld [vmem:[%s304 + $0x10] sm:$0xff]
  %v350 = vld [vmem:[%s304 + $0x18] sm:$0xff]
  %355 = vrot.lane.b32.xlu0 %v347, 126
  %v356 = vpop.permute.xlu0 %355
  %357 = vrot.lane.b32.xlu0 %v348, 126
  %v358 = vpop.permute.xlu0 %357
  %359 = vrot.lane.b32.xlu0 %v349, 126
  %v360 = vpop.permute.xlu0 %359
  %361 = vrot.lane.b32.xlu0 %v350, 126
  %v362 = vpop.permute.xlu0 %361
  %v363 = vrot.slane %v356, 4
  %v364 = vrot.slane %v358, 4
  %v365 = vrot.slane %v360, 4
  %v366 = vrot.slane %v362, 4
  %v367 = vsel %vm43, %v363, %v364
  %v368 = vsel %vm80, %v356, %v367
  %v369 = vsel %vm80, %v358, %v364
  %v370 = vsel %vm43, %v365, %v366
  %v371 = vsel %vm80, %v360, %v370
  %v372 = vsel %vm80, %v362, %v366
  %377 = vst [vmem:[#allocation2 + $0x6c] sm:$0xff] %v368
  %378 = vst [vmem:[#allocation2 + $0x74] sm:$0xf] %v369
  %379 = vst [vmem:[#allocation2 + $0x84] sm:$0xff] %v371
  %380 = vst [vmem:[#allocation2 + $0x8c] sm:$0xf] %v372
  %v381 = vld [vmem:[%s304] sm:$0xff]
  %v382 = vld [vmem:[%s304 + $0x8] sm:$0xff]
  %v383 = vld [vmem:[%s304 + $0x10] sm:$0xff]
  %v384 = vld [vmem:[%s304 + $0x18] sm:$0xff]
  %389 = vrot.lane.b32.xlu0 %v381, 110
  %v390 = vpop.permute.xlu0 %389
  %391 = vrot.lane.b32.xlu0 %v382, 110
  %v392 = vpop.permute.xlu0 %391
  %393 = vrot.lane.b32.xlu0 %v383, 110
  %v394 = vpop.permute.xlu0 %393
  %395 = vrot.lane.b32.xlu0 %v384, 110
  %v396 = vpop.permute.xlu0 %395
  %v397 = vrot.slane %v390, 4
  %v398 = vrot.slane %v392, 4
  %v399 = vrot.slane %v394, 4
  %v400 = vrot.slane %v396, 4
  %v401 = vsel %vm43, %v397, %v398
  %v402 = vsel %vm115, %v390, %v401
  %v403 = vsel %vm115, %v392, %v398
  %v404 = vsel %vm43, %v399, %v400
  %v405 = vsel %vm115, %v394, %v404
  %v406 = vsel %vm115, %v396, %v400
  %411 = vst [vmem:[#allocation2 + $0x9c] sm:$0xff] %v402
  %412 = vst [vmem:[#allocation2 + $0xa4] sm:$0xf] %v403
  %413 = vst [vmem:[#allocation2 + $0xb4] sm:$0xff] %v405
  %414 = vst [vmem:[#allocation2 + $0xbc] sm:$0xf] %v406
  %v415 = vld [vmem:[%s304] sm:$0xff]
  %v416 = vld [vmem:[%s304 + $0x8] sm:$0xff]
  %v417 = vld [vmem:[%s304 + $0x10] sm:$0xff]
  %v418 = vld [vmem:[%s304 + $0x18] sm:$0xff]
  %423 = vrot.lane.b32.xlu0 %v415, 109
  %v424 = vpop.permute.xlu0 %423
  %425 = vrot.lane.b32.xlu0 %v416, 109
  %v426 = vpop.permute.xlu0 %425
  %427 = vrot.lane.b32.xlu0 %v417, 109
  %v428 = vpop.permute.xlu0 %427
  %429 = vrot.lane.b32.xlu0 %v418, 109
  %v430 = vpop.permute.xlu0 %429
  %v431 = vrot.slane %v424, 4
  %v432 = vrot.slane %v426, 4
  %v433 = vrot.slane %v428, 4
  %v434 = vrot.slane %v430, 4
  %v435 = vsel %vm43, %v431, %v432
  %v436 = vsel %vm150, %v424, %v435
  %v437 = vsel %vm150, %v426, %v432
  %v438 = vsel %vm43, %v433, %v434
  %v439 = vsel %vm150, %v428, %v438
  %v440 = vsel %vm150, %v430, %v434
  %445 = vst [vmem:[#allocation2 + $0xcc] sm:$0xff] %v436
  %446 = vst [vmem:[#allocation2 + $0xd4] sm:$0xf] %v437
  %447 = vst [vmem:[#allocation2 + $0xe4] sm:$0xff] %v439
  %448 = vst [vmem:[#allocation2 + $0xec] sm:$0xf] %v440
  %v449 = vld [vmem:[%s304] sm:$0xff]
  %v450 = vld [vmem:[%s304 + $0x8] sm:$0xff]
  %v451 = vld [vmem:[%s304 + $0x10] sm:$0xff]
  %v452 = vld [vmem:[%s304 + $0x18] sm:$0xff]
  %457 = vrot.lane.b32.xlu0 %v449, 108
  %v458 = vpop.permute.xlu0 %457
  %459 = vrot.lane.b32.xlu0 %v450, 108
  %v460 = vpop.permute.xlu0 %459
  %461 = vrot.lane.b32.xlu0 %v451, 108
  %v462 = vpop.permute.xlu0 %461
  %463 = vrot.lane.b32.xlu0 %v452, 108
  %v464 = vpop.permute.xlu0 %463
  %v465 = vrot.slane %v458, 4
  %v466 = vrot.slane %v460, 4
  %v467 = vrot.slane %v462, 4
  %v468 = vrot.slane %v464, 4
  %v469 = vsel %vm43, %v465, %v466
  %v470 = vsel %vm185, %v458, %v469
  %v471 = vsel %vm185, %v460, %v466
  %v472 = vsel %vm43, %v467, %v468
  %v473 = vsel %vm185, %v462, %v472
  %v474 = vsel %vm185, %v464, %v468
  %479 = vst [vmem:[#allocation2 + $0xfc] sm:$0xff] %v470
  %480 = vst [vmem:[#allocation2 + $0x104] sm:$0xf] %v471
  %481 = vst [vmem:[#allocation2 + $0x114] sm:$0xff] %v473
  %482 = vst [vmem:[#allocation2 + $0x11c] sm:$0xf] %v474
  %v483 = vld [vmem:[%s304] sm:$0xff]
  %v484 = vld [vmem:[%s304 + $0x8] sm:$0xff]
  %v485 = vld [vmem:[%s304 + $0x10] sm:$0xff]
  %v486 = vld [vmem:[%s304 + $0x18] sm:$0xff]
  %491 = vrot.lane.b32.xlu0 %v483, 92
  %v492 = vpop.permute.xlu0 %491
  %493 = vrot.lane.b32.xlu0 %v484, 92
  %v494 = vpop.permute.xlu0 %493
  %495 = vrot.lane.b32.xlu0 %v485, 92
  %v496 = vpop.permute.xlu0 %495
  %497 = vrot.lane.b32.xlu0 %v486, 92
  %v498 = vpop.permute.xlu0 %497
  %v499 = vrot.slane %v492, 4
  %v500 = vrot.slane %v494, 4
  %v501 = vrot.slane %v496, 4
  %v502 = vrot.slane %v498, 4
  %v503 = vsel %vm43, %v499, %v500
  %v504 = vsel %vm220, %v492, %v503
  %v505 = vsel %vm220, %v494, %v500
  %v506 = vsel %vm43, %v501, %v502
  %v507 = vsel %vm220, %v496, %v506
  %v508 = vsel %vm220, %v498, %v502
  %513 = vst [vmem:[#allocation2 + $0x12c] sm:$0xff] %v504
  %514 = vst [vmem:[#allocation2 + $0x134] sm:$0xf] %v505
  %515 = vst [vmem:[#allocation2 + $0x144] sm:$0xff] %v507
  %516 = vst [vmem:[#allocation2 + $0x14c] sm:$0xf] %v508
  %v517 = vld [vmem:[%s304] sm:$0xff]
  %v518 = vld [vmem:[%s304 + $0x8] sm:$0xff]
  %v519 = vld [vmem:[%s304 + $0x10] sm:$0xff]
  %v520 = vld [vmem:[%s304 + $0x18] sm:$0xff]
  %525 = vrot.lane.b32.xlu0 %v517, 91
  %v526 = vpop.permute.xlu0 %525
  %527 = vrot.lane.b32.xlu0 %v518, 91
  %v528 = vpop.permute.xlu0 %527
  %529 = vrot.lane.b32.xlu0 %v519, 91
  %v530 = vpop.permute.xlu0 %529
  %531 = vrot.lane.b32.xlu0 %v520, 91
  %v532 = vpop.permute.xlu0 %531
  %v533 = vrot.slane %v526, 4
  %v534 = vrot.slane %v528, 4
  %v535 = vrot.slane %v530, 4
  %v536 = vrot.slane %v532, 4
  %v537 = vsel %vm43, %v533, %v534
  %v538 = vsel %vm255, %v526, %v537
  %v539 = vsel %vm255, %v528, %v534
  %v540 = vsel %vm43, %v535, %v536
  %v541 = vsel %vm255, %v530, %v540
  %v542 = vsel %vm255, %v532, %v536
  %547 = vst [vmem:[#allocation2 + $0x15c] sm:$0xff] %v538
  %548 = vst [vmem:[#allocation2 + $0x164] sm:$0xf] %v539
  %549 = vst [vmem:[#allocation2 + $0x174] sm:$0xff] %v541
  %550 = vst [vmem:[#allocation2 + $0x17c] sm:$0xf] %v542
  %v551 = vld [vmem:[%s304] sm:$0xff]
  %v552 = vld [vmem:[%s304 + $0x8] sm:$0xff]
  %v553 = vld [vmem:[%s304 + $0x10] sm:$0xff]
  %v554 = vld [vmem:[%s304 + $0x18] sm:$0xff]
  %559 = vrot.lane.b32.xlu0 %v551, 90
  %v560 = vpop.permute.xlu0 %559
  %561 = vrot.lane.b32.xlu0 %v552, 90
  %v562 = vpop.permute.xlu0 %561
  %563 = vrot.lane.b32.xlu0 %v553, 90
  %v564 = vpop.permute.xlu0 %563
  %565 = vrot.lane.b32.xlu0 %v554, 90
  %v566 = vpop.permute.xlu0 %565
  %v567 = vrot.slane %v560, 4
  %v568 = vrot.slane %v562, 4
  %v569 = vrot.slane %v564, 4
  %v570 = vrot.slane %v566, 4
  %v571 = vsel %vm43, %v567, %v568
  %v572 = vsel %vm290, %v560, %v571
  %v573 = vsel %vm290, %v562, %v568
  %v574 = vsel %vm43, %v569, %v570
  %v575 = vsel %vm290, %v564, %v574
  %v576 = vsel %vm290, %v566, %v570
  %581 = vst [vmem:[#allocation2 + $0x18c] sm:$0xff] %v572
  %582 = vst [vmem:[#allocation2 + $0x194] sm:$0xf] %v573
  %583 = vst [vmem:[#allocation2 + $0x1a4] sm:$0xff] %v575
  %584 = vst [vmem:[#allocation2 + $0x1ac] sm:$0xf] %v576
  %v585 = vld [vmem:[%s1] sm:$0xff]
  %v586 = vld [vmem:[#allocation2] sm:$0xff]
  %v587 = vld [vmem:[#allocation2 + $0x8] sm:$0xff]
  %v588 = vld [vmem:[#allocation2 + $0x10] sm:$0xff]
  %v589 = vld [vmem:[#allocation2 + $0x18] sm:$0xff]
  %v590 = vld [vmem:[#allocation2 + $0x20] sm:$0xff]
  %v591 = vld [vmem:[#allocation2 + $0x28] sm:$0xff]
  %v592 = vld [vmem:[#allocation2 + $0x30] sm:$0xff]
  %v593 = vld [vmem:[#allocation2 + $0x38] sm:$0xff]
  %v594 = vld [vmem:[#allocation2 + $0x40] sm:$0xff]
  %v595 = vld [vmem:[#allocation2 + $0x48] sm:$0xff]
  %v596 = vld [vmem:[#allocation2 + $0x50] sm:$0xff]
  %v597 = vld [vmem:[#allocation2 + $0x58] sm:$0xff]
  %v598 = vld [vmem:[#allocation2 + $0x60] sm:$0xff]
  %v599 = vld [vmem:[#allocation2 + $0x68] sm:$0xff]
  %v600 = vld [vmem:[#allocation2 + $0x70] sm:$0xff]
  %v601 = vld [vmem:[#allocation2 + $0x78] sm:$0xff]
  %v602 = vld [vmem:[#allocation2 + $0x80] sm:$0xff]
  %v603 = vld [vmem:[#allocation2 + $0x88] sm:$0xff]
  %v604 = vld [vmem:[#allocation2 + $0x90] sm:$0xff]
  %v605 = vld [vmem:[#allocation2 + $0x98] sm:$0xff]
  %v606 = vld [vmem:[#allocation2 + $0xa0] sm:$0xff]
  %v607 = vld [vmem:[#allocation2 + $0xa8] sm:$0xff]
  %v608 = vld [vmem:[#allocation2 + $0xb0] sm:$0xff]
  %v609 = vld [vmem:[#allocation2 + $0xb8] sm:$0xff]
  %v610 = vld [vmem:[#allocation2 + $0xc0] sm:$0xff]
  %v611 = vld [vmem:[#allocation2 + $0xc8] sm:$0xff]
  %v612 = vld [vmem:[#allocation2 + $0xd0] sm:$0xff]
  %v613 = vld [vmem:[#allocation2 + $0xd8] sm:$0xff]
  %v614 = vld [vmem:[#allocation2 + $0xe0] sm:$0xff]
  %v615 = vld [vmem:[#allocation2 + $0xe8] sm:$0xff]
  %v616 = vld [vmem:[#allocation2 + $0xf0] sm:$0xff]
  %v617 = vld [vmem:[#allocation2 + $0xf8] sm:$0xff]
  %v618 = vld [vmem:[#allocation2 + $0x100] sm:$0xff]
  %v619 = vld [vmem:[#allocation2 + $0x108] sm:$0xff]
  %v620 = vld [vmem:[#allocation2 + $0x110] sm:$0xff]
  %v621 = vld [vmem:[#allocation2 + $0x118] sm:$0xff]
  %v622 = vld [vmem:[#allocation2 + $0x120] sm:$0xff]
  %v623 = vld [vmem:[#allocation2 + $0x128] sm:$0xff]
  %v624 = vld [vmem:[#allocation2 + $0x130] sm:$0xff]
  %v625 = vld [vmem:[#allocation2 + $0x138] sm:$0xff]
  %v626 = vld [vmem:[#allocation2 + $0x140] sm:$0xff]
  %v627 = vld [vmem:[#allocation2 + $0x148] sm:$0xff]
  %v628 = vld [vmem:[#allocation2 + $0x150] sm:$0xff]
  %v629 = vld [vmem:[#allocation2 + $0x158] sm:$0xff]
  %v630 = vld [vmem:[#allocation2 + $0x160] sm:$0xff]
  %v631 = vld [vmem:[#allocation2 + $0x168] sm:$0xff]
  %v632 = vld [vmem:[#allocation2 + $0x170] sm:$0xff]
  %v633 = vld [vmem:[#allocation2 + $0x178] sm:$0xff]
  %v634 = vld [vmem:[#allocation2 + $0x180] sm:$0xff]
  %v635 = vld [vmem:[#allocation2 + $0x188] sm:$0xff]
  %v636 = vld [vmem:[#allocation2 + $0x190] sm:$0xff]
  %v637 = vld [vmem:[#allocation2 + $0x198] sm:$0xff]
  %v638 = vld [vmem:[#allocation2 + $0x1a0] sm:$0xff]
  %v639 = vld [vmem:[#allocation2 + $0x1a8] sm:$0xff]
  %v640 = vld [vmem:[%s2] sm:$0xff]
  %642 = vset.pattern.permute.xlu0 0
  %643 = vperm.xlu0 %642, %v640
  %v644 = vpop.permute.xlu0 %643
  %v647 = vunpack.c.l.b16 %v585
  %v648 = vunpack.c.h.b16 %v585
  %v649 = vpack.c.b16 %v647, %v647
  %v650 = vpack.c.b16 %v648, %v648
  %v706 = vunpack.c.l.b16 %v586
  %v707 = vunpack.c.h.b16 %v586
  %v708 = vunpack.c.l.b16 %v587
  %v709 = vunpack.c.h.b16 %v587
  %v710 = vunpack.c.l.b16 %v588
  %v711 = vunpack.c.h.b16 %v588
  %v712 = vunpack.c.l.b16 %v589
  %v713 = vunpack.c.h.b16 %v589
  %v714 = vunpack.c.l.b16 %v590
  %v715 = vunpack.c.h.b16 %v590
  %v716 = vunpack.c.l.b16 %v591
  %v717 = vunpack.c.h.b16 %v591
  %v718 = vunpack.c.l.b16 %v592
  %v719 = vunpack.c.h.b16 %v592
  %v720 = vunpack.c.l.b16 %v593
  %v721 = vunpack.c.h.b16 %v593
  %v722 = vunpack.c.l.b16 %v594
  %v723 = vunpack.c.h.b16 %v594
  %v724 = vunpack.c.l.b16 %v595
  %v725 = vunpack.c.h.b16 %v595
  %v726 = vunpack.c.l.b16 %v596
  %v727 = vunpack.c.h.b16 %v596
  %v728 = vunpack.c.l.b16 %v597
  %v729 = vunpack.c.h.b16 %v597
  %v730 = vunpack.c.l.b16 %v598
  %v731 = vunpack.c.h.b16 %v598
  %v732 = vunpack.c.l.b16 %v599
  %v733 = vunpack.c.h.b16 %v599
  %v734 = vunpack.c.l.b16 %v600
  %v735 = vunpack.c.h.b16 %v600
  %v736 = vunpack.c.l.b16 %v601
  %v737 = vunpack.c.h.b16 %v601
  %v738 = vunpack.c.l.b16 %v602
  %v739 = vunpack.c.h.b16 %v602
  %v740 = vunpack.c.l.b16 %v603
  %v741 = vunpack.c.h.b16 %v603
  %v742 = vunpack.c.l.b16 %v604
  %v743 = vunpack.c.h.b16 %v604
  %v744 = vunpack.c.l.b16 %v605
  %v745 = vunpack.c.h.b16 %v605
  %v746 = vunpack.c.l.b16 %v606
  %v747 = vunpack.c.h.b16 %v606
  %v748 = vunpack.c.l.b16 %v607
  %v749 = vunpack.c.h.b16 %v607
  %v750 = vunpack.c.l.b16 %v608
  %v751 = vunpack.c.h.b16 %v608
  %v752 = vunpack.c.l.b16 %v609
  %v753 = vunpack.c.h.b16 %v609
  %v754 = vunpack.c.l.b16 %v610
  %v755 = vunpack.c.h.b16 %v610
  %v756 = vunpack.c.l.b16 %v611
  %v757 = vunpack.c.h.b16 %v611
  %v758 = vunpack.c.l.b16 %v612
  %v759 = vunpack.c.h.b16 %v612
  %v760 = vunpack.c.l.b16 %v613
  %v761 = vunpack.c.h.b16 %v613
  %v762 = vunpack.c.l.b16 %v614
  %v763 = vunpack.c.h.b16 %v614
  %v764 = vunpack.c.l.b16 %v615
  %v765 = vunpack.c.h.b16 %v615
  %v766 = vunpack.c.l.b16 %v616
  %v767 = vunpack.c.h.b16 %v616
  %v768 = vunpack.c.l.b16 %v617
  %v769 = vunpack.c.h.b16 %v617
  %v770 = vunpack.c.l.b16 %v618
  %v771 = vunpack.c.h.b16 %v618
  %v772 = vunpack.c.l.b16 %v619
  %v773 = vunpack.c.h.b16 %v619
  %v774 = vunpack.c.l.b16 %v620
  %v775 = vunpack.c.h.b16 %v620
  %v776 = vunpack.c.l.b16 %v621
  %v777 = vunpack.c.h.b16 %v621
  %v778 = vunpack.c.l.b16 %v622
  %v779 = vunpack.c.h.b16 %v622
  %v780 = vunpack.c.l.b16 %v623
  %v781 = vunpack.c.h.b16 %v623
  %v782 = vunpack.c.l.b16 %v624
  %v783 = vunpack.c.h.b16 %v624
  %v784 = vunpack.c.l.b16 %v625
  %v785 = vunpack.c.h.b16 %v625
  %v786 = vunpack.c.l.b16 %v626
  %v787 = vunpack.c.h.b16 %v626
  %v788 = vunpack.c.l.b16 %v627
  %v789 = vunpack.c.h.b16 %v627
  %v790 = vunpack.c.l.b16 %v628
  %v791 = vunpack.c.h.b16 %v628
  %v792 = vunpack.c.l.b16 %v629
  %v793 = vunpack.c.h.b16 %v629
  %v794 = vunpack.c.l.b16 %v630
  %v795 = vunpack.c.h.b16 %v630
  %v796 = vunpack.c.l.b16 %v631
  %v797 = vunpack.c.h.b16 %v631
  %v798 = vunpack.c.l.b16 %v632
  %v799 = vunpack.c.h.b16 %v632
  %v800 = vunpack.c.l.b16 %v633
  %v801 = vunpack.c.h.b16 %v633
  %v802 = vunpack.c.l.b16 %v634
  %v803 = vunpack.c.h.b16 %v634
  %v804 = vunpack.c.l.b16 %v635
  %v805 = vunpack.c.h.b16 %v635
  %v806 = vunpack.c.l.b16 %v636
  %v807 = vunpack.c.h.b16 %v636
  %v808 = vunpack.c.l.b16 %v637
  %v809 = vunpack.c.h.b16 %v637
  %v810 = vunpack.c.l.b16 %v638
  %v811 = vunpack.c.h.b16 %v638
  %v812 = vunpack.c.l.b16 %v639
  %v813 = vunpack.c.h.b16 %v639
  %v814 = vpack.c.b16 %v712, %v706
  %v815 = vpack.c.b16 %v713, %v707
  %v816 = vpack.c.b16 %v714, %v708
  %v817 = vpack.c.b16 %v715, %v709
  %v818 = vpack.c.b16 %v716, %v710
  %v819 = vpack.c.b16 %v717, %v711
  %v820 = vpack.c.b16 %v724, %v718
  %v821 = vpack.c.b16 %v725, %v719
  %v822 = vpack.c.b16 %v726, %v720
  %v823 = vpack.c.b16 %v727, %v721
  %v824 = vpack.c.b16 %v728, %v722
  %v825 = vpack.c.b16 %v729, %v723
  %v826 = vpack.c.b16 %v736, %v730
  %v827 = vpack.c.b16 %v737, %v731
  %v828 = vpack.c.b16 %v738, %v732
  %v829 = vpack.c.b16 %v739, %v733
  %v830 = vpack.c.b16 %v740, %v734
  %v831 = vpack.c.b16 %v741, %v735
  %v832 = vpack.c.b16 %v748, %v742
  %v833 = vpack.c.b16 %v749, %v743
  %v834 = vpack.c.b16 %v750, %v744
  %v835 = vpack.c.b16 %v751, %v745
  %v836 = vpack.c.b16 %v752, %v746
  %v837 = vpack.c.b16 %v753, %v747
  %v838 = vpack.c.b16 %v760, %v754
  %v839 = vpack.c.b16 %v761, %v755
  %v840 = vpack.c.b16 %v762, %v756
  %v841 = vpack.c.b16 %v763, %v757
  %v842 = vpack.c.b16 %v764, %v758
  %v843 = vpack.c.b16 %v765, %v759
  %v844 = vpack.c.b16 %v772, %v766
  %v845 = vpack.c.b16 %v773, %v767
  %v846 = vpack.c.b16 %v774, %v768
  %v847 = vpack.c.b16 %v775, %v769
  %v848 = vpack.c.b16 %v776, %v770
  %v849 = vpack.c.b16 %v777, %v771
  %v850 = vpack.c.b16 %v784, %v778
  %v851 = vpack.c.b16 %v785, %v779
  %v852 = vpack.c.b16 %v786, %v780
  %v853 = vpack.c.b16 %v787, %v781
  %v854 = vpack.c.b16 %v788, %v782
  %v855 = vpack.c.b16 %v789, %v783
  %v856 = vpack.c.b16 %v796, %v790
  %v857 = vpack.c.b16 %v797, %v791
  %v858 = vpack.c.b16 %v798, %v792
  %v859 = vpack.c.b16 %v799, %v793
  %v860 = vpack.c.b16 %v800, %v794
  %v861 = vpack.c.b16 %v801, %v795
  %v862 = vpack.c.b16 %v808, %v802
  %v863 = vpack.c.b16 %v809, %v803
  %v864 = vpack.c.b16 %v810, %v804
  %v865 = vpack.c.b16 %v811, %v805
  %v866 = vpack.c.b16 %v812, %v806
  %v867 = vpack.c.b16 %v813, %v807
  %vm922 = vcmask 130048
  %v924 = vsel %vm922, %v650, 0
  %926 = vmatpush.bf16.msra.mxu0 %v856
  %927 = vmatpush.bf16.msra.mxu0 %v850
  %928 = vmatpush.bf16.msra.mxu0 %v844
  %929 = vmatpush.bf16.msra.mxu0 %v838
  %930 = vmatpush.bf16.msra.mxu0 %v832
  %931 = vmatpush.bf16.msra.mxu0 %v826
  %932 = vmatpush.bf16.msra.mxu0 %v820
  %933 = vmatpush.bf16.msra.mxu0 %v814
  %934 = vmatmul.bf16.gmra.mxu0 %v649
  %v935 = vpop.f32.mrf.mxu0
  %v936 = vadd.f32 %v644, %v935
  %v937 = vpop.f32.mrf.mxu0
  %938 = vdwg.mxu0
  %939 = vmatpush.bf16.msra.mxu0 0
  %940 = vmatpush.bf16.msra.mxu0 0
  %941 = vmatpush.bf16.msra.mxu0 0
  %942 = vmatpush.bf16.msra.mxu0 0
  %943 = vmatpush.bf16.msra.mxu0 0
  %944 = vmatpush.bf16.msra.mxu0 0
  %945 = vmatpush.bf16.msra.mxu0 0
  %946 = vmatpush.bf16.msra.mxu0 %v862
  %947 = vmatmul.bf16.gmra.mxu0 %v924
  %v948 = vpop.f32.mrf.mxu0
  %v949 = vadd.f32 %v936, %v948
  %v950 = vpop.f32.mrf.mxu0
  %951 = vdwg.mxu0
  %952 = vmatpush.bf16.msra.mxu0 %v857
  %953 = vmatpush.bf16.msra.mxu0 %v851
  %954 = vmatpush.bf16.msra.mxu0 %v845
  %955 = vmatpush.bf16.msra.mxu0 %v839
  %956 = vmatpush.bf16.msra.mxu0 %v833
  %957 = vmatpush.bf16.msra.mxu0 %v827
  %958 = vmatpush.bf16.msra.mxu0 %v821
  %959 = vmatpush.bf16.msra.mxu0 %v815
  %960 = vmatmul.bf16.gmra.mxu0 %v649
  %v961 = vpop.f32.mrf.mxu0
  %v962 = vadd.f32 %v644, %v961
  %v963 = vpop.f32.mrf.mxu0
  %964 = vdwg.mxu0
  %965 = vmatpush.bf16.msra.mxu0 0
  %966 = vmatpush.bf16.msra.mxu0 0
  %967 = vmatpush.bf16.msra.mxu0 0
  %968 = vmatpush.bf16.msra.mxu0 0
  %969 = vmatpush.bf16.msra.mxu0 0
  %970 = vmatpush.bf16.msra.mxu0 0
  %971 = vmatpush.bf16.msra.mxu0 0
  %972 = vmatpush.bf16.msra.mxu0 %v863
  %973 = vmatmul.bf16.gmra.mxu0 %v924
  %v974 = vpop.f32.mrf.mxu0
  %v975 = vadd.f32 %v962, %v974
  %v976 = vpop.f32.mrf.mxu0
  %977 = vdwg.mxu0
  %978 = vmatpush.bf16.msra.mxu0 %v858
  %979 = vmatpush.bf16.msra.mxu0 %v852
  %980 = vmatpush.bf16.msra.mxu0 %v846
  %981 = vmatpush.bf16.msra.mxu0 %v840
  %982 = vmatpush.bf16.msra.mxu0 %v834
  %983 = vmatpush.bf16.msra.mxu0 %v828
  %984 = vmatpush.bf16.msra.mxu0 %v822
  %985 = vmatpush.bf16.msra.mxu0 %v816
  %986 = vmatmul.bf16.gmra.mxu0 %v649
  %v987 = vpop.f32.mrf.mxu0
  %v988 = vadd.f32 %v644, %v987
  %v989 = vpop.f32.mrf.mxu0
  %990 = vdwg.mxu0
  %991 = vmatpush.bf16.msra.mxu0 0
  %992 = vmatpush.bf16.msra.mxu0 0
  %993 = vmatpush.bf16.msra.mxu0 0
  %994 = vmatpush.bf16.msra.mxu0 0
  %995 = vmatpush.bf16.msra.mxu0 0
  %996 = vmatpush.bf16.msra.mxu0 0
  %997 = vmatpush.bf16.msra.mxu0 0
  %998 = vmatpush.bf16.msra.mxu0 %v864
  %999 = vmatmul.bf16.gmra.mxu0 %v924
  %v1000 = vpop.f32.mrf.mxu0
  %v1001 = vadd.f32 %v988, %v1000
  %v1002 = vpop.f32.mrf.mxu0
  %1003 = vdwg.mxu0
  %1004 = vmatpush.bf16.msra.mxu0 %v859
  %1005 = vmatpush.bf16.msra.mxu0 %v853
  %1006 = vmatpush.bf16.msra.mxu0 %v847
  %1007 = vmatpush.bf16.msra.mxu0 %v841
  %1008 = vmatpush.bf16.msra.mxu0 %v835
  %1009 = vmatpush.bf16.msra.mxu0 %v829
  %1010 = vmatpush.bf16.msra.mxu0 %v823
  %1011 = vmatpush.bf16.msra.mxu0 %v817
  %1012 = vmatmul.bf16.gmra.mxu0 %v649
  %v1013 = vpop.f32.mrf.mxu0
  %v1014 = vadd.f32 %v644, %v1013
  %v1015 = vpop.f32.mrf.mxu0
  %1016 = vdwg.mxu0
  %1017 = vmatpush.bf16.msra.mxu0 0
  %1018 = vmatpush.bf16.msra.mxu0 0
  %1019 = vmatpush.bf16.msra.mxu0 0
  %1020 = vmatpush.bf16.msra.mxu0 0
  %1021 = vmatpush.bf16.msra.mxu0 0
  %1022 = vmatpush.bf16.msra.mxu0 0
  %1023 = vmatpush.bf16.msra.mxu0 0
  %1024 = vmatpush.bf16.msra.mxu0 %v865
  %1025 = vmatmul.bf16.gmra.mxu0 %v924
  %v1026 = vpop.f32.mrf.mxu0
  %v1027 = vadd.f32 %v1014, %v1026
  %v1028 = vpop.f32.mrf.mxu0
  %1029 = vdwg.mxu0
  %1030 = vmatpush.bf16.msra.mxu0 %v860
  %1031 = vmatpush.bf16.msra.mxu0 %v854
  %1032 = vmatpush.bf16.msra.mxu0 %v848
  %1033 = vmatpush.bf16.msra.mxu0 %v842
  %1034 = vmatpush.bf16.msra.mxu0 %v836
  %1035 = vmatpush.bf16.msra.mxu0 %v830
  %1036 = vmatpush.bf16.msra.mxu0 %v824
  %1037 = vmatpush.bf16.msra.mxu0 %v818
  %1038 = vmatmul.bf16.gmra.mxu0 %v649
  %v1039 = vpop.f32.mrf.mxu0
  %v1040 = vadd.f32 %v644, %v1039
  %v1041 = vpop.f32.mrf.mxu0
  %1042 = vdwg.mxu0
  %1043 = vmatpush.bf16.msra.mxu0 0
  %1044 = vmatpush.bf16.msra.mxu0 0
  %1045 = vmatpush.bf16.msra.mxu0 0
  %1046 = vmatpush.bf16.msra.mxu0 0
  %1047 = vmatpush.bf16.msra.mxu0 0
  %1048 = vmatpush.bf16.msra.mxu0 0
  %1049 = vmatpush.bf16.msra.mxu0 0
  %1050 = vmatpush.bf16.msra.mxu0 %v866
  %1051 = vmatmul.bf16.gmra.mxu0 %v924
  %v1052 = vpop.f32.mrf.mxu0
  %v1053 = vadd.f32 %v1040, %v1052
  %v1054 = vpop.f32.mrf.mxu0
  %1055 = vdwg.mxu0
  %1056 = vmatpush.bf16.msra.mxu0 %v861
  %1057 = vmatpush.bf16.msra.mxu0 %v855
  %1058 = vmatpush.bf16.msra.mxu0 %v849
  %1059 = vmatpush.bf16.msra.mxu0 %v843
  %1060 = vmatpush.bf16.msra.mxu0 %v837
  %1061 = vmatpush.bf16.msra.mxu0 %v831
  %1062 = vmatpush.bf16.msra.mxu0 %v825
  %1063 = vmatpush.bf16.msra.mxu0 %v819
  %1064 = vmatmul.bf16.gmra.mxu0 %v649
  %v1065 = vpop.f32.mrf.mxu0
  %v1066 = vadd.f32 %v644, %v1065
  %v1067 = vpop.f32.mrf.mxu0
  %1068 = vdwg.mxu0
  %1069 = vmatpush.bf16.msra.mxu0 0
  %1070 = vmatpush.bf16.msra.mxu0 0
  %1071 = vmatpush.bf16.msra.mxu0 0
  %1072 = vmatpush.bf16.msra.mxu0 0
  %1073 = vmatpush.bf16.msra.mxu0 0
  %1074 = vmatpush.bf16.msra.mxu0 0
  %1075 = vmatpush.bf16.msra.mxu0 0
  %1076 = vmatpush.bf16.msra.mxu0 %v867
  %1077 = vmatmul.bf16.gmra.mxu0 %v924
  %v1078 = vpop.f32.mrf.mxu0
  %v1079 = vadd.f32 %v1066, %v1078
  %v1080 = vpop.f32.mrf.mxu0
  %1081 = vdwg.mxu0
  %v1082 = vsub.f32 0.0, %v949
  %v1083 = vsub.f32 0.0, %v975
  %v1084 = vsub.f32 0.0, %v1001
  %v1085 = vsub.f32 0.0, %v1027
  %v1086 = vsub.f32 0.0, %v1053
  %v1087 = vsub.f32 0.0, %v1079
  %v1088 = vmul.f32 %v1082, 1.442695
  %v1089 = vpow.pop %v1088
  %v1090 = vmul.f32 %v1083, 1.442695
  %v1091 = vpow.pop %v1090
  %v1092 = vmul.f32 %v1084, 1.442695
  %v1093 = vpow.pop %v1092
  %v1094 = vmul.f32 %v1085, 1.442695
  %v1095 = vpow.pop %v1094
  %v1096 = vmul.f32 %v1086, 1.442695
  %v1097 = vpow.pop %v1096
  %v1098 = vmul.f32 %v1087, 1.442695
  %v1099 = vpow.pop %v1098
  %v1100 = vadd.f32 %v1089, 1.0
  %v1101 = vadd.f32 %v1091, 1.0
  %v1102 = vadd.f32 %v1093, 1.0
  %v1103 = vadd.f32 %v1095, 1.0
  %v1104 = vadd.f32 %v1097, 1.0
  %v1105 = vadd.f32 %v1099, 1.0
  %v1106 = vrcp.pop %v1100
  %v1107 = vrcp.pop %v1101
  %v1108 = vrcp.pop %v1102
  %v1109 = vrcp.pop %v1103
  %v1110 = vrcp.pop %v1104
  %v1111 = vrcp.pop %v1105
  %v1112 = vmul.f32 %v1100, %v1106
  %v1113 = vmul.f32 %v1101, %v1107
  %v1114 = vmul.f32 %v1102, %v1108
  %v1115 = vmul.f32 %v1103, %v1109
  %v1116 = vmul.f32 %v1104, %v1110
  %v1117 = vmul.f32 %v1105, %v1111
  %v1118 = vsub.f32 2.0, %v1112
  %v1119 = vsub.f32 2.0, %v1113
  %v1120 = vsub.f32 2.0, %v1114
  %v1121 = vsub.f32 2.0, %v1115
  %v1122 = vsub.f32 2.0, %v1116
  %v1123 = vsub.f32 2.0, %v1117
  %v1124 = vmul.f32 %v1106, %v1118
  %v1125 = vmul.f32 %v1107, %v1119
  %v1126 = vmul.f32 %v1108, %v1120
  %v1127 = vmul.f32 %v1109, %v1121
  %v1128 = vmul.f32 %v1110, %v1122
  %v1129 = vmul.f32 %v1111, %v1123
  %v1130 = vmul.f32 %v949, %v1124
  %v1131 = vmul.f32 %v975, %v1125
  %v1132 = vmul.f32 %v1001, %v1126
  %v1133 = vmul.f32 %v1027, %v1127
  %v1134 = vmul.f32 %v1053, %v1128
  %v1135 = vmul.f32 %v1079, %v1129
  %1136 = vst [vmem:[%s3] sm:$0xff] %v1130
  %1137 = vst [vmem:[%s3 + $0x8] sm:$0xff] %v1131
  %1138 = vst [vmem:[%s3 + $0x10] sm:$0xff] %v1132
  %s1139 = scalar_lea.vmem %s3, 24
  %1140 = vst [vmem:[%s1139] sm:$0xff] %v1133
  %1141 = vst [vmem:[%s1139 + $0x8] sm:$0xff] %v1134
  %1142 = vst [vmem:[%s1139 + $0x10] sm:$0xff] %v1135
  // Predicated region
  $region14: #{conv_silu.1} parent=0 // pred_check
    _
  $region15: #{conv_silu.1} parent=0 // pred_check_branch
    %1144 = sbr.rel (0) target = $region17
  $region16: #{conv_silu.1} parent=0 // pred_region
    _
  $region17: #{conv_silu.1} parent=0 // pred_fallthru
    _
  // Predicated region
  $region18: #{conv_silu.1} parent=0 // pred_check
    _
  $region19: #{conv_silu.1} parent=0 // pred_check_branch
    %1146 = sbr.rel (0) target = $region21
  $region20: #{conv_silu.1} parent=0 // pred_region
    _
  $region21: #{conv_silu.1} parent=0 // pred_fallthru
    _

</llo_original>
